<compile_context>
chip_gen: v5e
topology: v5e:2x2
jax: 0.10.0
libtpu: 0.0.40
codegen_flags: <defaults>
</compile_context>

<pallas_src>
import jax
import jax.numpy as jnp
from jax.experimental import pallas as pl
from jax.experimental.pallas import tpu as pltpu


def _prompt_concat_kernel(prefix_ref, ctx_ref, suffix_ref, out_ref):
    """Lane-dense 2-D layout: one class per sublane row, token*dim on lanes.

    prefix_ref: (TC, D)             VMEM
    ctx_ref:    (1,  n_ctx * D)     VMEM (same block every grid step)
    suffix_ref: (TC, n_suffix * D)  VMEM
    out_ref:    (TC, seq_len * D)   VMEM

    Three direct, lane-aligned sub-stores; each output byte is written once.
    """
    tc = out_ref.shape[0]
    d = prefix_ref.shape[1]
    ctx_w = ctx_ref.shape[1]
    suf_w = suffix_ref.shape[1]

    out_ref[:, 0:d] = prefix_ref[...]
    # Sublane-broadcast of the shared ctx row feeding the store directly
    # (no (TC, n_ctx, D) temp, no sublane concatenate).
    out_ref[:, d:d + ctx_w] = jnp.broadcast_to(ctx_ref[...], (tc, ctx_w))
    out_ref[:, d + ctx_w:d + ctx_w + suf_w] = suffix_ref[...]


def _tpu_vmem_capacity_bytes():
    """Per-TensorCore VMEM capacity; conservative (v7x) default on failure."""
    try:
        return int(pltpu.get_tpu_info().vmem_capacity_bytes)
    except Exception:
        return 64 << 20


def _choose_class_tile(n_cls, n_suffix, seq_len, d, itemsize, vmem_cap):
    """Classes per grid step, sized against a generation-aware VMEM budget."""
    if vmem_cap <= (96 << 20):
        # v7x-like: 64 MiB VMEM per TC, 2 TensorCores share 3.2 TB/s HBM.
        budget = 20 << 20
        multi_tc = True
    else:
        # v5e / v6e: 128 MiB VMEM, single TensorCore.
        budget = 40 << 20
        multi_tc = False

    # Double-buffered prefix/suffix inputs + output tile (ctx is tiny, ignored).
    per_class = 2 * (d + n_suffix * d + seq_len * d) * itemsize
    tc_max = max(1, min(n_cls, budget // max(per_class, 1)))
    tc = tc_max

    if multi_tc and n_cls >= 16:
        # Both v7x TCs' DMA engines are needed to approach HBM roofline:
        # target an even number of balanced "parallel" steps (>= 2).
        steps = max(2, pl.cdiv(n_cls, tc_max))
        if steps % 2:
            steps += 1
        tc = pl.cdiv(n_cls, steps)

    if tc < n_cls:
        # (8, 128) layout constraint: a partial-class tile must be a multiple
        # of 8 sublanes (round down to stay within the VMEM budget).
        tc_dn = (tc // 8) * 8
        tc = tc_dn if tc_dn >= 8 else min(8, n_cls)
    return int(tc)


def build_prompts(prefix, ctx, suffix, *, small_fallback_bytes=1 << 20,
                  class_tile=None):
    """prompts = cat([prefix, ctx.expand(n_cls,-1,-1), suffix], dim=1)."""
    n_cls, one, d = prefix.shape
    assert one == 1
    n_ctx, d_ctx = ctx.shape
    assert d_ctx == d
    n_suffix = suffix.shape[1]
    seq_len = 1 + n_ctx + n_suffix
    dtype = prefix.dtype
    itemsize = jnp.dtype(dtype).itemsize
    ctx = ctx.astype(dtype)

    # Small-problem fallback: fixed pallas_call / per-step overhead dominates;
    # XLA's fused broadcast+concat is already at roofline at these sizes.
    out_bytes = n_cls * seq_len * d * itemsize
    if out_bytes < small_fallback_bytes:
        ctx_b = jnp.broadcast_to(ctx[None], (n_cls, n_ctx, d))
        return jnp.concatenate([prefix, ctx_b, suffix], axis=1)

    vmem_cap = _tpu_vmem_capacity_bytes()
    if class_tile is not None:
        tc = int(class_tile)
        if tc >= n_cls:
            tc = n_cls
        else:
            tc = max(8, (tc // 8) * 8)
    else:
        tc = _choose_class_tile(n_cls, n_suffix, seq_len, d, itemsize, vmem_cap)

    seq_w = seq_len * d
    # VMEM the pipeline actually needs (double-buffered tiles + shared ctx).
    needed = 2 * (tc * d + tc * n_suffix * d + tc * seq_w + n_ctx * d) * itemsize
    limit_cap = (48 << 20) if vmem_cap <= (96 << 20) else (100 << 20)
    if needed + (4 << 20) > limit_cap:
        # Degenerate shapes that cannot be tiled legally within VMEM: let XLA
        # handle them rather than risk an OOM.
        ctx_b = jnp.broadcast_to(ctx[None], (n_cls, n_ctx, d))
        return jnp.concatenate([prefix, ctx_b, suffix], axis=1)
    vmem_limit = int(min(limit_cap, max(needed + (4 << 20), 32 << 20)))

    n_steps = pl.cdiv(n_cls, tc)

    # Free, row-major-contiguous reshapes to the lane-dense 2-D layout.
    prefix2 = prefix.reshape(n_cls, d)
    ctx2 = ctx.reshape(1, n_ctx * d)
    suffix2 = suffix.reshape(n_cls, n_suffix * d)

    grid_spec = pltpu.PrefetchScalarGridSpec(
        num_scalar_prefetch=0,
        grid=(n_steps,),
        in_specs=[
            pl.BlockSpec((tc, d), lambda i: (i, 0)),              # prefix tile
            pl.BlockSpec((1, n_ctx * d), lambda i: (0, 0)),       # ctx (shared block)
            pl.BlockSpec((tc, n_suffix * d), lambda i: (i, 0)),   # suffix tile
        ],
        out_specs=pl.BlockSpec((tc, seq_w), lambda i: (i, 0)),
    )
    # Ragged last class tile: Pallas non-divisible-grid handling masks the
    # out-of-bounds rows of the final output block (garbage input rows only
    # ever feed those masked rows), so no jnp.pad / output slice is needed.

    read_bytes = (prefix2.size + ctx2.size + suffix2.size) * itemsize
    write_bytes = n_cls * seq_w * itemsize
    cost = pl.CostEstimate(flops=0, transcendentals=0,
                           bytes_accessed=read_bytes + write_bytes)

    out2 = pl.pallas_call(
        _prompt_concat_kernel,
        out_shape=jax.ShapeDtypeStruct((n_cls, seq_w), dtype),
        grid_spec=grid_spec,
        compiler_params=pltpu.CompilerParams(
            dimension_semantics=("parallel",),
            vmem_limit_bytes=vmem_limit),
        cost_estimate=cost,
    )(prefix2, ctx2, suffix2)

    return out2.reshape(n_cls, seq_len, d)


class PromptLearner:
    """JAX/Pallas re-implementation of the PyTorch PromptLearner forward.

    Parameters / buffers are initialized deterministically in-script
    (synthetic stand-ins for the CLIP token embeddings).
    """

    def __init__(self, n_cls, n_ctx, ctx_dim, seq_len, cls_step, key,
                 dtype=jnp.float32, small_fallback_bytes=1 << 20,
                 class_tile=None):
        assert seq_len > 1 + n_ctx
        self.n_cls = n_cls
        self.n_ctx = n_ctx
        self.ctx_dim = ctx_dim
        self.cls_step = cls_step
        self.class_token_position = "end"
        self.small_fallback_bytes = small_fallback_bytes
        self.class_tile = class_tile
        n_suffix = seq_len - 1 - n_ctx

        k_ctx, k_pre, k_suf = jax.random.split(key, 3)
        # ctx ~ N(0, 0.02) like nn.init.normal_(ctx_vectors, std=0.02)
        self.ctx = (0.02 * jax.random.normal(k_ctx, (n_ctx, ctx_dim))).astype(dtype)
        # synthetic token-embedding prefix/suffix buffers
        self.token_prefix = jax.random.normal(k_pre, (n_cls, 1, ctx_dim)).astype(dtype)
        self.token_suffix = jax.random.normal(k_suf, (n_cls, n_suffix, ctx_dim)).astype(dtype)
        # TODO(synk): test_token_prefix/suffix and EGTEA buffers would be built
        # the same way from real tokenized class names; in this synthetic setup
        # the `test` / `test_egtea` branches reuse the train buffers.

    def __call__(self, start=-1, end=-1, test=False, **kwargs):
        ctx = self.ctx
        step = self.cls_step
        if self.class_token_position != "end":
            raise ValueError
        if self.n_cls > step:
            # NOTE: start/end must be static Python ints (matches PyTorch usage).
            assert start >= 0 and end > start
            prefix = self.token_prefix[start:end]
            suffix = self.token_suffix[start:end]
        else:
            prefix = self.token_prefix
            suffix = self.token_suffix
        return build_prompts(prefix, ctx, suffix,
                             small_fallback_bytes=self.small_fallback_bytes,
                             class_tile=self.class_tile)


if __name__ == "__main__":
    key = jax.random.PRNGKey(0)

    # small shapes: 8 classes, 4 context tokens, seq_len 16, embed dim 128
    n_cls, n_ctx, ctx_dim, seq_len = 8, 4, 128, 16

    # Force the Pallas path (these small shapes would otherwise take the
    # XLA-concat fallback).
    learner = PromptLearner(n_cls=n_cls, n_ctx=n_ctx, ctx_dim=ctx_dim,
                            seq_len=seq_len, cls_step=100, key=key,
                            small_fallback_bytes=0)
    prompts = jax.block_until_ready(learner())
    ctx_exp = jnp.broadcast_to(learner.ctx[None, :, :], (n_cls, n_ctx, ctx_dim))
    ref = jnp.concatenate([learner.token_prefix, ctx_exp, learner.token_suffix], axis=1)
    assert prompts.shape == (n_cls, seq_len, ctx_dim)
    assert jnp.allclose(prompts, ref)

    # chunked (n_cls > cls_step) branch with static start/end slicing
    learner2 = PromptLearner(n_cls=n_cls, n_ctx=n_ctx, ctx_dim=ctx_dim,
                             seq_len=seq_len, cls_step=4, key=key,
                             small_fallback_bytes=0)
    chunk = jax.block_until_ready(learner2(start=2, end=6))
    ref2 = jnp.concatenate(
        [learner2.token_prefix[2:6],
         jnp.broadcast_to(learner2.ctx[None], (4, n_ctx, ctx_dim)),
         learner2.token_suffix[2:6]], axis=1)
    assert jnp.allclose(chunk, ref2)

    # ragged multi-step path: 20 classes with an 8-class tile -> 3 grid steps,
    # last step partial; exercises the non-divisible-grid write masking.
    learner3 = PromptLearner(n_cls=20, n_ctx=n_ctx, ctx_dim=ctx_dim,
                             seq_len=seq_len, cls_step=100, key=key,
                             small_fallback_bytes=0, class_tile=8)
    p3 = jax.block_until_ready(learner3())
    ref3 = jnp.concatenate(
        [learner3.token_prefix,
         jnp.broadcast_to(learner3.ctx[None], (20, n_ctx, ctx_dim)),
         learner3.token_suffix], axis=1)
    assert p3.shape == (20, seq_len, ctx_dim)
    assert jnp.allclose(p3, ref3)

    # default small-problem fallback (plain XLA concat) must match as well
    learner4 = PromptLearner(n_cls=n_cls, n_ctx=n_ctx, ctx_dim=ctx_dim,
                             seq_len=seq_len, cls_step=100, key=key)
    p4 = jax.block_until_ready(learner4())
    assert jnp.allclose(p4, ref)

    print("KERNEL_OK")
</pallas_src>

<mosaic_0001>
module attributes {stable_mosaic.version = 11 : i64} {
  func.func @_prompt_concat_kernel(%arg0: i32, %arg1: memref<8x128xf32, #tpu.memory_space<vmem>>, %arg2: memref<1x512xf32, #tpu.memory_space<vmem>>, %arg3: memref<8x1408xf32, #tpu.memory_space<vmem>>, %arg4: memref<8x2048xf32, #tpu.memory_space<vmem>>) attributes {dimension_semantics = [#tpu.dimension_semantics<parallel>], iteration_bounds = array<i64: 1>, scalar_prefetch = 0 : i64, scratch_operands = 0 : i64, tpu.core_type = #tpu.core_type<tc>, window_params = [{transform_indices = @transform_0, window_bounds = array<i64: 8, 128>}, {pipeline_mode = #tpu.pipeline_mode<synchronous>, transform_indices = @transform_1, window_bounds = array<i64: 1, 512>}, {transform_indices = @transform_2, window_bounds = array<i64: 8, 1408>}, {transform_indices = @transform_3, window_bounds = array<i64: 8, 2048>}]} {
    %c0 = arith.constant 0 : index
    %c0_0 = arith.constant 0 : index
    %0 = vector.load %arg1[%c0, %c0_0] : memref<8x128xf32, #tpu.memory_space<vmem>>, vector<8x128xf32>
    %c0_1 = arith.constant 0 : index
    %c0_2 = arith.constant 0 : index
    %1 = vector.load %arg4[%c0_1, %c0_2] : memref<8x2048xf32, #tpu.memory_space<vmem>>, vector<8x128xf32>
    tpu.vector_store %arg4[%c0_1, %c0_2], %0 {strides = array<i32>} : memref<8x2048xf32, #tpu.memory_space<vmem>>, vector<8x128xf32>,
    %c0_3 = arith.constant 0 : index
    %c0_4 = arith.constant 0 : index
    %2 = vector.load %arg2[%c0_3, %c0_4] : memref<1x512xf32, #tpu.memory_space<vmem>>, vector<1x512xf32>
    %3 = vector.shape_cast %2 : vector<1x512xf32> to vector<1x512xf32>
    %4 = vector.broadcast %3 : vector<1x512xf32> to vector<8x512xf32>
    %c0_5 = arith.constant 0 : index
    %c128 = arith.constant 128 : index
    %5 = vector.load %arg4[%c0_5, %c128] : memref<8x2048xf32, #tpu.memory_space<vmem>>, vector<8x512xf32>
    tpu.vector_store %arg4[%c0_5, %c128], %4 {strides = array<i32>} : memref<8x2048xf32, #tpu.memory_space<vmem>>, vector<8x512xf32>,
    %c0_6 = arith.constant 0 : index
    %c0_7 = arith.constant 0 : index
    %6 = vector.load %arg3[%c0_6, %c0_7] : memref<8x1408xf32, #tpu.memory_space<vmem>>, vector<8x1408xf32>
    %c0_8 = arith.constant 0 : index
    %c640 = arith.constant 640 : index
    %7 = vector.load %arg4[%c0_8, %c640] : memref<8x2048xf32, #tpu.memory_space<vmem>>, vector<8x1408xf32>
    tpu.vector_store %arg4[%c0_8, %c640], %6 {strides = array<i32>} : memref<8x2048xf32, #tpu.memory_space<vmem>>, vector<8x1408xf32>,
    return
  }
  func.func @transform_0(%arg0: i32) -> (i32, i32) {
    %c0_i32 = arith.constant 0 : i32
    %c0_i32_0 = arith.constant 0 : i32
    return %arg0, %c0_i32 : i32, i32
  }
  func.func @transform_1(%arg0: i32) -> (i32, i32) {
    %c0_i32 = arith.constant 0 : i32
    %c0_i32_0 = arith.constant 0 : i32
    %c0_i32_1 = arith.constant 0 : i32
    return %c0_i32, %c0_i32_0 : i32, i32
  }
  func.func @transform_2(%arg0: i32) -> (i32, i32) {
    %c0_i32 = arith.constant 0 : i32
    %c0_i32_0 = arith.constant 0 : i32
    return %arg0, %c0_i32 : i32, i32
  }
  func.func @transform_3(%arg0: i32) -> (i32, i32) {
    %c0_i32 = arith.constant 0 : i32
    %c0_i32_0 = arith.constant 0 : i32
    return %arg0, %c0_i32 : i32, i32
  }
}

</mosaic_0001>

<llo_original>
// kernel: tpu_custom_call.1
$region0: #{tpu_custom_call.1}
  #allocation0 [shape = 'u32[]', space=smem, size = 0x4, offset = 0x4, fixed_abs, tag = 'smem constant byte address 0x4 - core index']
  #allocation1 [shape = 'u32[72,128]{1,0:T(1,128)}', space=vmem, size = 0x9000, scoped, tag = 'internal scratch']
  %s0 = inlined_call_operand.hbm [shape: f32[8,128], index: 0, kind: input, shape index: {}]
  %s1 = inlined_call_operand.hbm [shape: f32[1,512], index: 1, kind: input, shape index: {}]
  %s2 = inlined_call_operand.hbm [shape: f32[8,1408], index: 2, kind: input, shape index: {}]
  %s3 = inlined_call_operand.hbm [shape: f32[8,2048], index: 3, kind: output, shape index: {}]
  %s4 = sld [smem:[#allocation0]]
  $region34: #{tpu_custom_call.1} parent=0
    _
  %s6 = ssub.s32 1, %s4
  %s7 = scalar_select 0, %s6, %s4
  $region1: #{tpu_custom_call.1} parent=0
    #allocation2 [shape = 'u8[4096]{0}', space=vmem, size = 0x1000, scoped, tag = 'input window, operand 0, single buffered']
    #allocation3 [shape = 's32[1]{0}', space=sflag, size = 0x4, scoped, tag = 'scoped memory for tpu_custom_call.1']
    #allocation4 [shape = 's32[1]{0}', space=sflag, size = 0x4, scoped, tag = 'scoped memory for tpu_custom_call.1']
    #allocation5 [shape = 'u8[2048]{0}', space=vmem, size = 0x800, scoped, tag = 'input window, operand 1, single buffered']
    #allocation6 [shape = 's32[1]{0}', space=sflag, size = 0x4, scoped, tag = 'scoped memory for tpu_custom_call.1']
    #allocation7 [shape = 'u8[45056]{0}', space=vmem, size = 0xb000, scoped, tag = 'input window, operand 2, single buffered']
    #allocation8 [shape = 'u8[65536]{0}', space=vmem, size = 0x10000, scoped, tag = 'output window, operand 0, single buffered']
    %8 = vsyncpa [#allocation3], 0
    %9 = vsyncpa [#allocation6], 0
    %10 = vsyncpa [#allocation4], 0
    // Predicated region
    $region2: #{tpu_custom_call.1} parent=1 // pred_check
      _
    $region3: #{tpu_custom_call.1} parent=1 // pred_check_branch
      %12 = sbr.rel (0) target = $region5
    $region4: #{tpu_custom_call.1} parent=1 // pred_region
      %14 = vsyncadd [#allocation3], 0
      %s16 = sshll.u32 %s0, 4
      %s17 = int_to_ptr.hbm [resolvable:$true] %s16
      %s18 = sshll.u32 [#allocation2], 4
      %s19 = int_to_ptr.vmem [resolvable:$true] %s18
      %21 = dma.hbm_to_vmem [thread:$0]  %s17, 128, %s19, [#allocation3]
    $region5: #{tpu_custom_call.1} parent=1 // pred_fallthru
      _
    // Predicated region
    $region6: #{tpu_custom_call.1} parent=1 // pred_check
      _
    $region7: #{tpu_custom_call.1} parent=1 // pred_check_branch
      %23 = sbr.rel (0) target = $region9
    $region8: #{tpu_custom_call.1} parent=1 // pred_region
      %25 = vsyncadd [#allocation6], 0
      %s27 = sshll.u32 %s1, 4
      %s28 = int_to_ptr.hbm [resolvable:$true] %s27
      %s29 = sshll.u32 [#allocation5], 4
      %s30 = int_to_ptr.vmem [resolvable:$true] %s29
      %32 = dma.hbm_to_vmem [thread:$0]  %s28, 64, %s30, [#allocation6]
    $region9: #{tpu_custom_call.1} parent=1 // pred_fallthru
      _
    // Predicated region
    $region10: #{tpu_custom_call.1} parent=1 // pred_check
      _
    $region11: #{tpu_custom_call.1} parent=1 // pred_check_branch
      %34 = sbr.rel (0) target = $region13
    $region12: #{tpu_custom_call.1} parent=1 // pred_region
      %36 = vsyncadd [#allocation6], 0
      %s38 = sshll.u32 %s2, 4
      %s39 = int_to_ptr.hbm [resolvable:$true] %s38
      %s40 = sshll.u32 [#allocation7], 4
      %s41 = int_to_ptr.vmem [resolvable:$true] %s40
      %43 = dma.hbm_to_vmem [thread:$0]  %s39, 1408, %s41, [#allocation6]
    $region13: #{tpu_custom_call.1} parent=1 // pred_fallthru
      _
    // Predicated region
    $region14: #{tpu_custom_call.1} parent=1 // pred_check
      _
    $region15: #{tpu_custom_call.1} parent=1 // pred_check_branch
      %45 = sbr.rel (0) target = $region17
    $region16: #{tpu_custom_call.1} parent=1 // pred_region
      %47 = dma.done [#allocation3], 128
    $region17: #{tpu_custom_call.1} parent=1 // pred_fallthru
      _
    // Predicated region
    $region18: #{tpu_custom_call.1} parent=1 // pred_check
      _
    $region19: #{tpu_custom_call.1} parent=1 // pred_check_branch
      %49 = sbr.rel (0) target = $region21
    $region20: #{tpu_custom_call.1} parent=1 // pred_region
      %51 = dma.done [#allocation6], 64
    $region21: #{tpu_custom_call.1} parent=1 // pred_fallthru
      _
    // Predicated region
    $region22: #{tpu_custom_call.1} parent=1 // pred_check
      _
    $region23: #{tpu_custom_call.1} parent=1 // pred_check_branch
      %53 = sbr.rel (0) target = $region25
    $region24: #{tpu_custom_call.1} parent=1 // pred_region
      %55 = dma.done [#allocation6], 1408
    $region25: #{tpu_custom_call.1} parent=1 // pred_fallthru
      _
    %v56 = vld [vmem:[#allocation2] sm:$0xff]
    %57 = vst [vmem:[#allocation8] sm:$0xff] %v56
    %v58 = vld [vmem:[#allocation5] sm:$0xf]
    %v60 = vperm.slane %v58, 0
    %v61 = vperm.slane %v58, 1
    %v62 = vperm.slane %v58, 2
    %v63 = vperm.slane %v58, 3
    %68 = vst [vmem:[#allocation8 + $0x8] sm:$0xff] %v60
    %69 = vst [vmem:[#allocation8 + $0x10] sm:$0xff] %v61
    %70 = vst [vmem:[#allocation8 + $0x18] sm:$0xff] %v62
    %71 = vst [vmem:[#allocation8 + $0x20] sm:$0xff] %v63
    %v72 = vld [vmem:[#allocation7] sm:$0xff]
    %v73 = vld [vmem:[#allocation7 + $0x8] sm:$0xff]
    %v74 = vld [vmem:[#allocation7 + $0x10] sm:$0xff]
    %v75 = vld [vmem:[#allocation7 + $0x18] sm:$0xff]
    %v76 = vld [vmem:[#allocation7 + $0x20] sm:$0xff]
    %v77 = vld [vmem:[#allocation7 + $0x28] sm:$0xff]
    %v78 = vld [vmem:[#allocation7 + $0x30] sm:$0xff]
    %v79 = vld [vmem:[#allocation7 + $0x38] sm:$0xff]
    %v80 = vld [vmem:[#allocation7 + $0x40] sm:$0xff]
    %v81 = vld [vmem:[#allocation7 + $0x48] sm:$0xff]
    %v82 = vld [vmem:[#allocation7 + $0x50] sm:$0xff]
    %83 = vst [vmem:[#allocation8 + $0x28] sm:$0xff] %v72
    %84 = vst [vmem:[#allocation8 + $0x30] sm:$0xff] %v73
    %85 = vst [vmem:[#allocation8 + $0x38] sm:$0xff] %v74
    %86 = vst [vmem:[#allocation8 + $0x40] sm:$0xff] %v75
    %87 = vst [vmem:[#allocation8 + $0x48] sm:$0xff] %v76
    %88 = vst [vmem:[#allocation8 + $0x50] sm:$0xff] %v77
    %89 = vst [vmem:[#allocation8 + $0x58] sm:$0xff] %v78
    %90 = vst [vmem:[#allocation8 + $0x60] sm:$0xff] %v79
    %91 = vst [vmem:[#allocation8 + $0x68] sm:$0xff] %v80
    %92 = vst [vmem:[#allocation8 + $0x70] sm:$0xff] %v81
    %93 = vst [vmem:[#allocation8 + $0x78] sm:$0xff] %v82
    // Predicated region
    $region26: #{tpu_custom_call.1} parent=1 // pred_check
      _
    $region27: #{tpu_custom_call.1} parent=1 // pred_check_branch
      %95 = sbr.rel (0) target = $region29
    $region28: #{tpu_custom_call.1} parent=1 // pred_region
      %97 = vsyncadd [#allocation4], 0
      %s99 = sshll.u32 [#allocation8], 4
      %s100 = int_to_ptr.vmem [resolvable:$true] %s99
      %s101 = sshll.u32 %s3, 4
      %s102 = int_to_ptr.hbm [resolvable:$true] %s101
      %104 = dma.vmem_to_hbm [thread:$0]  %s100, 2048, %s102, [#allocation4]
    $region29: #{tpu_custom_call.1} parent=1 // pred_fallthru
      _
    // Predicated region
    $region30: #{tpu_custom_call.1} parent=1 // pred_check
      _
    $region31: #{tpu_custom_call.1} parent=1 // pred_check_branch
      %106 = sbr.rel (0) target = $region33
    $region32: #{tpu_custom_call.1} parent=1 // pred_region
      %108 = dma.done [#allocation4], 2048
    $region33: #{tpu_custom_call.1} parent=1 // pred_fallthru
      _
    %109 = vsyncpa [#allocation3], 1
    %110 = vsyncpa [#allocation6], 1
    %111 = vsyncpa [#allocation4], 1

</llo_original>
